<compile_context>
chip_gen: v7x
topology: tpu7x:2x2x1
jax: 0.10.0
libtpu: 0.0.40
codegen_flags: <defaults>
</compile_context>

<pallas_src>
import functools

import jax
import jax.numpy as jnp
from jax.experimental import pallas as pl
from jax.experimental.pallas import tpu as pltpu

EPS = 1e-6
_MIB = 1024 * 1024


def _round_up(x, m):
    return ((x + m - 1) // m) * m


def _pad_dim(d):
    """Lane-dense hidden dim: leave 128-aligned dims untouched; otherwise pad
    to a multiple of 256 (v6e/v7x MXU tile); 128 suffices for tiny dims."""
    if d % 128 == 0:
        return d
    if d <= 128:
        return 128
    return _round_up(d, 256)


@functools.lru_cache(maxsize=None)
def _vmem_capacity_bytes():
    try:
        cap = int(getattr(pltpu.get_tpu_info(), "vmem_capacity_bytes", 0) or 0)
        if cap > 0:
            return cap
    except Exception:
        pass
    return 64 * _MIB  # conservative fallback (v7x per-TensorCore)


def _layernorm(x, a2, b2, d_valid):
    """torch-style LayerNorm: unbiased std (N-1), divide by (std + eps).

    Padded lanes of x are zero; instead of a full-width lane mask we subtract
    the pads' contribution (each pad lane's diff == -mean) from the sum of
    squares -- a (rows, 1) scalar fix-up instead of an iota/compare/select pass.
    """
    dp = x.shape[-1]
    mean = jnp.sum(x, axis=-1, keepdims=True) * (1.0 / d_valid)
    diff = x - mean
    ssq = jnp.sum(diff * diff, axis=-1, keepdims=True)
    n_pad = dp - d_valid
    if n_pad:
        ssq = ssq - float(n_pad) * (mean * mean)
    # NOTE: d_valid == 1 would divide by zero, exactly like torch.std(unbiased).
    var = ssq * (1.0 / (d_valid - 1))
    inv = pl.reciprocal(jnp.sqrt(var) + EPS, approx=True)  # EUP slot
    return (diff * inv) * a2 + b2


def _kernel_resident_w(x_ref, ab_ref, bias_ref, w_ref, o_ref, *, d_valid):
    """One (TR, Dp) row tile; full (Dp, Dp) bf16 weight resident in VMEM."""
    x = x_ref[...].astype(jnp.float32)
    normed = _layernorm(x, ab_ref[0:1, :], ab_ref[1:2, :], d_valid)
    y = jnp.dot(normed.astype(jnp.bfloat16), w_ref[...],
                preferred_element_type=jnp.float32)
    y = y + bias_ref[...]
    # dropout: identity in eval/inference mode.
    # TODO(synk): training-mode dropout would use pltpu.prng_seed +
    # pltpu.stateful_bernoulli with a per-tile seed.
    o_ref[...] = (x + y).astype(o_ref.dtype)


def _kernel_col_stream(x_ref, ab_ref, bias_ref, w_ref, o_ref, *, d_valid, tn):
    """(TR, Dp) row tile x (TN) output-column tile; weight streamed as slabs."""
    j = pl.program_id(1)
    col0 = pl.multiple_of(j * tn, tn)
    x = x_ref[...].astype(jnp.float32)
    # Recompute LayerNorm per column tile: O(TR*Dp) VPU work vs O(TR*Dp*TN)
    # MXU work, and the x tile is not re-DMA'd across j (same block index).
    normed = _layernorm(x, ab_ref[0:1, :], ab_ref[1:2, :], d_valid)
    y = jnp.dot(normed.astype(jnp.bfloat16), w_ref[...],
                preferred_element_type=jnp.float32)
    y = y + bias_ref[...]
    x_cols = x_ref[:, pl.ds(col0, tn)].astype(jnp.float32)
    o_ref[...] = (x_cols + y).astype(o_ref.dtype)


def pack_sublayer_params(a_2, b_2, w, bias):
    """Pad + cast parameters ONCE at init (outside the per-call jit).

    `w` must be laid out so the sublayer computes `normed @ w`; callers holding
    an nn.Linear weight must pass `linear.weight.T`.
    """
    D = int(w.shape[0])
    Dp = _pad_dim(D)
    if Dp == D:
        ab = jnp.stack([a_2, b_2]).astype(jnp.float32)
        bias_p = bias.astype(jnp.float32).reshape(1, D)
        wp = w.astype(jnp.bfloat16)
    else:
        ab = (jnp.zeros((2, Dp), jnp.float32)
              .at[0, :D].set(a_2.astype(jnp.float32))
              .at[1, :D].set(b_2.astype(jnp.float32)))
        bias_p = (jnp.zeros((1, Dp), jnp.float32)
                  .at[0, :D].set(bias.astype(jnp.float32)))
        wp = jnp.zeros((Dp, Dp), jnp.bfloat16).at[:D, :D].set(w.astype(jnp.bfloat16))
    return ab, bias_p, wp


def _vmem_estimate(tr, dp, tn, col_tiled):
    x_bufs = 2 * tr * dp * 4                              # double-buffered input
    out_bufs = 2 * tr * (tn if col_tiled else dp) * 4     # double-buffered output
    w_bufs = (2 * dp * tn * 2) if col_tiled else (dp * dp * 2)  # bf16 weight
    params = 3 * dp * 4
    temps = 8 * tr * dp * 4                               # conservative f32 temps
    return x_bufs + out_bufs + w_bufs + params + temps


@functools.partial(jax.jit, static_argnames=("force_column_tiling", "column_tile"))
def sublayer_connection(x, ab, bias, w, *, force_column_tiling=False,
                        column_tile=None):
    """out = x + Linear(LayerNorm_torch(x)); dropout is identity (eval mode).

    x: [B, S, D]; (ab, bias, w) come from pack_sublayer_params (padded to Dp).
    """
    B, S, D = x.shape
    assert D >= 2, "torch.std(unbiased=True) needs at least 2 features"
    Dp = w.shape[-1]
    assert w.shape == (Dp, Dp) and ab.shape == (2, Dp) and bias.shape == (1, Dp)
    assert Dp % 128 == 0 and Dp >= D

    R = B * S
    Rp = _round_up(R, 8)
    x2d = x.reshape(R, D)
    padded = (Rp != R) or (Dp != D)
    xp = jnp.zeros((Rp, Dp), x.dtype).at[:R, :D].set(x2d) if padded else x2d

    cap = _vmem_capacity_bytes()
    vmem_limit = min(cap - 16 * _MIB, int(cap * 0.8))

    # Column-stream the weight when a single-buffered resident copy would eat
    # more than ~1/3 of the VMEM budget (v7x: D >= ~2K; v5e/v6e: D >= ~6K).
    col_tiled = bool(force_column_tiling) or (Dp * Dp * 2 > vmem_limit // 3)
    if column_tile is not None:
        col_tiled = True
        assert column_tile % 128 == 0 and Dp % column_tile == 0
        TN = int(column_tile)
    elif col_tiled:
        TN = next(t for t in (512, 256, 128) if Dp % t == 0)
    else:
        TN = Dp

    # Row tile: big on v5e/v6e (128 MiB VMEM), smaller on v7x (64 MiB); keep at
    # least 2 row tiles so both v7x TensorCores get work; shrink until the VMEM
    # estimate fits under the limit.
    base_tr = 512 if cap >= 96 * _MIB else 256
    TR = min(base_tr, max(8, _round_up((Rp + 1) // 2, 8)))
    while TR > 8 and _vmem_estimate(TR, Dp, TN, col_tiled) > vmem_limit:
        TR = max(8, _round_up(TR // 2, 8))

    n_row = pl.cdiv(Rp, TR)
    single = pl.Buffered(1)  # constant index_map -> double-buffering wastes VMEM

    if col_tiled:
        kernel = functools.partial(_kernel_col_stream, d_valid=D, tn=TN)
        grid = (n_row, Dp // TN)
        in_specs = [
            pl.BlockSpec((TR, Dp), lambda i, j: (i, 0)),                       # x rows
            pl.BlockSpec((2, Dp), lambda i, j: (0, 0), pipeline_mode=single),  # a_2/b_2
            pl.BlockSpec((1, TN), lambda i, j: (0, j)),                        # bias cols
            pl.BlockSpec((Dp, TN), lambda i, j: (0, j)),                       # weight cols
        ]
        out_specs = pl.BlockSpec((TR, TN), lambda i, j: (i, j))
        dims = ("parallel", "arbitrary")
    else:
        kernel = functools.partial(_kernel_resident_w, d_valid=D)
        grid = (n_row,)
        in_specs = [
            pl.BlockSpec((TR, Dp), lambda i: (i, 0)),                          # x rows
            pl.BlockSpec((2, Dp), lambda i: (0, 0), pipeline_mode=single),     # a_2/b_2
            pl.BlockSpec((1, Dp), lambda i: (0, 0), pipeline_mode=single),     # bias
            pl.BlockSpec((Dp, Dp), lambda i: (0, 0), pipeline_mode=single),    # weight
        ]
        out_specs = pl.BlockSpec((TR, Dp), lambda i: (i, 0))
        dims = ("parallel",)

    out = pl.pallas_call(
        kernel,
        out_shape=jax.ShapeDtypeStruct((Rp, Dp), x.dtype),
        grid_spec=pltpu.PrefetchScalarGridSpec(
            num_scalar_prefetch=0,
            grid=grid,
            in_specs=in_specs,
            out_specs=out_specs,
        ),
        compiler_params=pltpu.CompilerParams(
            dimension_semantics=dims,
            vmem_limit_bytes=vmem_limit),
    )(xp, ab, bias, w)

    if padded:
        out = out[:R, :D]
    return out.reshape(B, S, D)


def reference(x, a_2, b_2, w, bias):
    """Pure-JAX fp32 reference matching the PyTorch semantics exactly."""
    xf = x.astype(jnp.float32)
    mean = jnp.mean(xf, axis=-1, keepdims=True)
    std = jnp.std(xf, axis=-1, keepdims=True, ddof=1)  # unbiased, like torch.std
    normed = a_2 * (xf - mean) / (std + EPS) + b_2
    return (xf + normed @ w + bias).astype(x.dtype)


if __name__ == "__main__":
    root = jax.random.PRNGKey(0)

    cases = [
        dict(B=2, S=8, D=32, kw={}, tol=5e-3),     # unaligned D -> lane-padded path
        dict(B=2, S=8, D=128, kw={}, tol=5e-3),    # aligned fast path (no pad copies)
        dict(B=2, S=8, D=256,                       # column-streamed weight path
             kw=dict(force_column_tiling=True, column_tile=128), tol=1e-2),
    ]

    for idx, c in enumerate(cases):
        key = jax.random.fold_in(root, idx)
        kx, kw_, kb = jax.random.split(key, 3)
        B, S, D = c["B"], c["S"], c["D"]

        x = jax.random.normal(kx, (B, S, D), dtype=jnp.float32)
        a_2 = jnp.ones((D,), jnp.float32)
        b_2 = jnp.zeros((D,), jnp.float32)
        w = jax.random.normal(kw_, (D, D), dtype=jnp.float32) * 0.02
        bias = jax.random.normal(kb, (D,), dtype=jnp.float32) * 0.01

        ab, bias_p, wp = pack_sublayer_params(a_2, b_2, w, bias)
        out = sublayer_connection(x, ab, bias_p, wp, **c["kw"])
        out = jax.block_until_ready(out)

        ref = reference(x, a_2, b_2, w, bias)
        err = float(jnp.max(jnp.abs(out - ref)))
        assert out.shape == (B, S, D), (out.shape, (B, S, D))
        # Tolerance covers bf16 MXU inputs + EUP approximate reciprocal.
        assert err < c["tol"], f"case {idx} (D={D}): max err {err}"

    print("KERNEL_OK")
</pallas_src>

<mosaic_0001>
module attributes {stable_mosaic.version = 11 : i64} {
  func.func @_kernel_resident_w(%arg0: i32, %arg1: memref<8x128xf32, #tpu.memory_space<vmem>>, %arg2: memref<2x128xf32, #tpu.memory_space<vmem>>, %arg3: memref<1x128xf32, #tpu.memory_space<vmem>>, %arg4: memref<128x128xbf16, #tpu.memory_space<vmem>>, %arg5: memref<8x128xf32, #tpu.memory_space<vmem>>) attributes {dimension_semantics = [#tpu.dimension_semantics<parallel>], iteration_bounds = array<i64: 2>, scalar_prefetch = 0 : i64, scratch_operands = 0 : i64, tpu.core_type = #tpu.core_type<tc>, window_params = [{transform_indices = @transform_0, window_bounds = array<i64: 8, 128>}, {pipeline_mode = #tpu.pipeline_mode<synchronous>, transform_indices = @transform_1, window_bounds = array<i64: 2, 128>}, {pipeline_mode = #tpu.pipeline_mode<synchronous>, transform_indices = @transform_2, window_bounds = array<i64: 1, 128>}, {pipeline_mode = #tpu.pipeline_mode<synchronous>, transform_indices = @transform_3, window_bounds = array<i64: 128, 128>}, {transform_indices = @transform_4, window_bounds = array<i64: 8, 128>}]} {
    %c0 = arith.constant 0 : index
    %c0_0 = arith.constant 0 : index
    %0 = vector.load %arg1[%c0, %c0_0] : memref<8x128xf32, #tpu.memory_space<vmem>>, vector<8x128xf32>
    %c0_1 = arith.constant 0 : index
    %c0_2 = arith.constant 0 : index
    %1 = vector.load %arg2[%c0_1, %c0_2] : memref<2x128xf32, #tpu.memory_space<vmem>>, vector<1x128xf32>
    %c1 = arith.constant 1 : index
    %c0_3 = arith.constant 0 : index
    %2 = vector.load %arg2[%c1, %c0_3] : memref<2x128xf32, #tpu.memory_space<vmem>>, vector<1x128xf32>
    %cst = arith.constant dense<0.000000e+00> : vector<8xf32>
    %3 = vector.multi_reduction <add>, %0, %cst [1] : vector<8x128xf32> to vector<8xf32>
    %4 = vector.shape_cast %3 : vector<8xf32> to vector<8x1xf32>
    %cst_4 = arith.constant 3.125000e-02 : f32
    %5 = vector.broadcast %cst_4 : f32 to vector<8x1xf32>
    %6 = arith.mulf %4, %5 : vector<8x1xf32>
    %7 = vector.broadcast %6 : vector<8x1xf32> to vector<8x128xf32>
    %8 = arith.subf %0, %7 : vector<8x128xf32>
    %9 = arith.mulf %8, %8 : vector<8x128xf32>
    %cst_5 = arith.constant dense<0.000000e+00> : vector<8xf32>
    %10 = vector.multi_reduction <add>, %9, %cst_5 [1] : vector<8x128xf32> to vector<8xf32>
    %11 = vector.shape_cast %10 : vector<8xf32> to vector<8x1xf32>
    %12 = arith.mulf %6, %6 : vector<8x1xf32>
    %cst_6 = arith.constant 9.600000e+01 : f32
    %13 = vector.broadcast %cst_6 : f32 to vector<8x1xf32>
    %14 = arith.mulf %13, %12 : vector<8x1xf32>
    %15 = arith.subf %11, %14 : vector<8x1xf32>
    %cst_7 = arith.constant 0.0322580636 : f32
    %16 = vector.broadcast %cst_7 : f32 to vector<8x1xf32>
    %17 = arith.mulf %15, %16 : vector<8x1xf32>
    %18 = math.sqrt %17 : vector<8x1xf32>
    %cst_8 = arith.constant 9.99999997E-7 : f32
    %19 = vector.broadcast %cst_8 : f32 to vector<8x1xf32>
    %20 = arith.addf %18, %19 : vector<8x1xf32>
    %21 = tpu.reciprocal %20 {approx = true} : vector<8x1xf32> -> vector<8x1xf32>
    %22 = vector.broadcast %21 : vector<8x1xf32> to vector<8x128xf32>
    %23 = arith.mulf %8, %22 : vector<8x128xf32>
    %24 = vector.broadcast %1 : vector<1x128xf32> to vector<8x128xf32>
    %25 = arith.mulf %23, %24 : vector<8x128xf32>
    %26 = vector.broadcast %2 : vector<1x128xf32> to vector<8x128xf32>
    %27 = arith.addf %25, %26 : vector<8x128xf32>
    %28 = arith.truncf %27 : vector<8x128xf32> to vector<8x128xbf16>
    %c0_9 = arith.constant 0 : index
    %c0_10 = arith.constant 0 : index
    %29 = vector.load %arg4[%c0_9, %c0_10] : memref<128x128xbf16, #tpu.memory_space<vmem>>, vector<128x128xbf16>
    %cst_11 = arith.constant dense<0.000000e+00> : vector<8x128xf32>
    %30 = tpu.matmul %28, %29, %cst_11 {dimension_numbers = #tpu.dot_dimension_numbers<[1], [0], [0], [1], [0, 0, 1, 1], [], []>} : vector<8x128xbf16>, vector<128x128xbf16>, vector<8x128xf32> -> vector<8x128xf32>
    %c0_12 = arith.constant 0 : index
    %c0_13 = arith.constant 0 : index
    %31 = vector.load %arg3[%c0_12, %c0_13] : memref<1x128xf32, #tpu.memory_space<vmem>>, vector<1x128xf32>
    %32 = vector.broadcast %31 : vector<1x128xf32> to vector<8x128xf32>
    %33 = arith.addf %30, %32 : vector<8x128xf32>
    %34 = arith.addf %0, %33 : vector<8x128xf32>
    %c0_14 = arith.constant 0 : index
    %c0_15 = arith.constant 0 : index
    %35 = vector.load %arg5[%c0_14, %c0_15] : memref<8x128xf32, #tpu.memory_space<vmem>>, vector<8x128xf32>
    tpu.vector_store %arg5[%c0_14, %c0_15], %34 {strides = array<i32>} : memref<8x128xf32, #tpu.memory_space<vmem>>, vector<8x128xf32>,
    return
  }
  func.func @transform_0(%arg0: i32) -> (i32, i32) {
    %c0_i32 = arith.constant 0 : i32
    %c0_i32_0 = arith.constant 0 : i32
    return %arg0, %c0_i32 : i32, i32
  }
  func.func @transform_1(%arg0: i32) -> (i32, i32) {
    %c0_i32 = arith.constant 0 : i32
    %c0_i32_0 = arith.constant 0 : i32
    %c0_i32_1 = arith.constant 0 : i32
    return %c0_i32, %c0_i32_0 : i32, i32
  }
  func.func @transform_2(%arg0: i32) -> (i32, i32) {
    %c0_i32 = arith.constant 0 : i32
    %c0_i32_0 = arith.constant 0 : i32
    %c0_i32_1 = arith.constant 0 : i32
    return %c0_i32, %c0_i32_0 : i32, i32
  }
  func.func @transform_3(%arg0: i32) -> (i32, i32) {
    %c0_i32 = arith.constant 0 : i32
    %c0_i32_0 = arith.constant 0 : i32
    %c0_i32_1 = arith.constant 0 : i32
    return %c0_i32, %c0_i32_0 : i32, i32
  }
  func.func @transform_4(%arg0: i32) -> (i32, i32) {
    %c0_i32 = arith.constant 0 : i32
    %c0_i32_0 = arith.constant 0 : i32
    return %arg0, %c0_i32 : i32, i32
  }
}

</mosaic_0001>

<llo_original>
// kernel: sublayer_connection.1
$region0: #{sublayer_connection.1}
  #allocation0 [shape = 'u32[]', space=smem, size = 0x4, offset = 0x4, fixed_abs, tag = 'smem constant byte address 0x4 - core index']
  #allocation1 [shape = 'u32[144,128]{1,0:T(1,128)}', space=vmem, size = 0x12000, scoped, tag = 'internal scratch']
  %s0 = inlined_call_operand.vmem [shape: f32[16,128], index: 0, kind: input, shape index: {}]
  %s1 = inlined_call_operand.vmem [shape: f32[2,128], index: 1, kind: input, shape index: {}]
  %s2 = inlined_call_operand.vmem [shape: f32[1,128], index: 2, kind: input, shape index: {}]
  %s3 = inlined_call_operand.vmem [shape: bf16[128,128], index: 3, kind: input, shape index: {}]
  %s4 = inlined_call_operand.vmem [shape: f32[16,128], index: 4, kind: output, shape index: {}]
  %s5 = sld [smem:[#allocation0]]
  $region49: #{sublayer_connection.1} parent=0
    _
  %s7 = ssub.s32 1, %s5
  %s8 = scalar_select 0, %s7, %s5
  loop: start=0, step=1, limit=4
  $region2: #{sublayer_connection.1} parent=0 // loop_pre_header
    _
  $region3: #{sublayer_connection.1} parent=0 // loop_header
    %s10 = sphi 0, %s14
    %p11 = scmp.ge.s32.totalorder %s10, 4
    %s20 = sphi 0, %s22
    %s23 = sphi 0, %s20
    %s24 = sphi 0, %s23
    %s40 = sphi 0, %s24
    %s44 = sphi 0, %s44
    %s46 = sphi 0, %s44
    %s47 = sphi 0, %s46
    %s61 = sphi 0, %s47
    %s65 = sphi 0, %s65
    %s67 = sphi 0, %s65
    %s68 = sphi 0, %s67
    %s82 = sphi 0, %s68
    %s86 = sphi 0, %s86
    %s88 = sphi 0, %s86
    %s89 = sphi 0, %s88
    %s103 = sphi 0, %s89
    %s109 = sphi 0, %s111
    %s112 = sphi 0, %s109
    %s113 = sphi 0, %s112
    %s129 = sphi 0, %s113
  $region4: #{sublayer_connection.1} parent=0 // loop_header_branch
    %13 = sbr.rel (%p11) target = $region8
  $region5: #{sublayer_connection.1} parent=0 // loop_body
    %s15 = ssub.s32 %s10, 1
    %s16 = ssub.s32 %s10, 2
    %s17 = sadd.s32 %s10, 1
    %s18 = ssub.s32 %s10, %s17
    %p19 = scmp.eq.s32.totalorder %s18, 0
    %s21 = sadd.s32 %s20, 1
    %s22 = scalar_select %p19, %s20, %s21
    %p25 = pneg %p19
    %p26 = scmp.eq.s32.totalorder %s10, 1
    %p27 = por %p25, %p26
    %p28 = scmp.ne.s32.totalorder %s20, %s23
    %p29 = scmp.eq.s32.totalorder %s10, 0
    %p30 = por %p28, %p29
    %p31 = scmp.ne.s32.totalorder %s20, %s23
    %p32 = scmp.eq.s32.totalorder %s15, 1
    %p33 = por %p31, %p32
    %p34 = scmp.ne.s32.totalorder %s23, %s24
    %p35 = scmp.eq.s32.totalorder %s15, 0
    %p36 = por %p34, %p35
    %p37 = scmp.ne.s32.totalorder %s23, %s24
    %p38 = scmp.eq.s32.totalorder %s16, 1
    %p39 = por %p37, %p38
    %p41 = scmp.ne.s32.totalorder %s24, %s40
    %p42 = scmp.eq.s32.totalorder %s16, 0
    %p43 = por %p41, %p42
    %s45 = sadd.s32 %s44, 1
    %p48 = scmp.eq.s32.totalorder %s10, 1
    %p49 = scmp.ne.s32.totalorder %s44, %s46
    %p50 = scmp.eq.s32.totalorder %s10, 0
    %p51 = por %p49, %p50
    %p52 = scmp.ne.s32.totalorder %s44, %s46
    %p53 = scmp.eq.s32.totalorder %s15, 1
    %p54 = por %p52, %p53
    %p55 = scmp.ne.s32.totalorder %s46, %s47
    %p56 = scmp.eq.s32.totalorder %s15, 0
    %p57 = por %p55, %p56
    %p58 = scmp.ne.s32.totalorder %s46, %s47
    %p59 = scmp.eq.s32.totalorder %s16, 1
    %p60 = por %p58, %p59
    %p62 = scmp.ne.s32.totalorder %s47, %s61
    %p63 = scmp.eq.s32.totalorder %s16, 0
    %p64 = por %p62, %p63
    %s66 = sadd.s32 %s65, 1
    %p69 = scmp.eq.s32.totalorder %s10, 1
    %p70 = scmp.ne.s32.totalorder %s65, %s67
    %p71 = scmp.eq.s32.totalorder %s10, 0
    %p72 = por %p70, %p71
    %p73 = scmp.ne.s32.totalorder %s65, %s67
    %p74 = scmp.eq.s32.totalorder %s15, 1
    %p75 = por %p73, %p74
    %p76 = scmp.ne.s32.totalorder %s67, %s68
    %p77 = scmp.eq.s32.totalorder %s15, 0
    %p78 = por %p76, %p77
    %p79 = scmp.ne.s32.totalorder %s67, %s68
    %p80 = scmp.eq.s32.totalorder %s16, 1
    %p81 = por %p79, %p80
    %p83 = scmp.ne.s32.totalorder %s68, %s82
    %p84 = scmp.eq.s32.totalorder %s16, 0
    %p85 = por %p83, %p84
    %s87 = sadd.s32 %s86, 1
    %p90 = scmp.eq.s32.totalorder %s10, 1
    %p91 = scmp.ne.s32.totalorder %s86, %s88
    %p92 = scmp.eq.s32.totalorder %s10, 0
    %p93 = por %p91, %p92
    %p94 = scmp.ne.s32.totalorder %s86, %s88
    %p95 = scmp.eq.s32.totalorder %s15, 1
    %p96 = por %p94, %p95
    %p97 = scmp.ne.s32.totalorder %s88, %s89
    %p98 = scmp.eq.s32.totalorder %s15, 0
    %p99 = por %p97, %p98
    %p100 = scmp.ne.s32.totalorder %s88, %s89
    %p101 = scmp.eq.s32.totalorder %s16, 1
    %p102 = por %p100, %p101
    %p104 = scmp.ne.s32.totalorder %s89, %s103
    %p105 = scmp.eq.s32.totalorder %s16, 0
    %p106 = por %p104, %p105
    %s107 = ssub.s32 %s10, %s17
    %p108 = scmp.eq.s32.totalorder %s107, 0
    %s110 = sadd.s32 %s109, 1
    %s111 = scalar_select %p108, %s109, %s110
    %p114 = pneg %p108
    %p115 = scmp.eq.s32.totalorder %s10, 1
    %p116 = por %p114, %p115
    %p117 = scmp.ne.s32.totalorder %s109, %s112
    %p118 = scmp.eq.s32.totalorder %s10, 0
    %p119 = por %p117, %p118
    %p120 = scmp.ne.s32.totalorder %s109, %s112
    %p121 = scmp.eq.s32.totalorder %s15, 1
    %p122 = por %p120, %p121
    %p123 = scmp.ne.s32.totalorder %s112, %s113
    %p124 = scmp.eq.s32.totalorder %s15, 0
    %p125 = por %p123, %p124
    %p126 = scmp.ne.s32.totalorder %s112, %s113
    %p127 = scmp.eq.s32.totalorder %s16, 1
    %p128 = por %p126, %p127
    %p130 = scmp.ne.s32.totalorder %s113, %s129
    %p131 = scmp.eq.s32.totalorder %s16, 0
    %p132 = por %p130, %p131
    %p133 = scmp.le.s32.totalorder 1, %s10
    %p134 = scmp.lt.s32.totalorder %s10, 3
    %p135 = pnand %p133, %p134
    %p136 = pneg %p135
    // Predicated region
    $region9: #{sublayer_connection.1} parent=5 // pred_check
      _
    $region10: #{sublayer_connection.1} parent=5 // pred_check_branch
      %138 = sbr.rel (%p135) target = $region12
    $region11: #{sublayer_connection.1} parent=5 // pred_region
      %s139 = ssub.s32 %s10, 1
      // Predicated region
      $region13: #{sublayer_connection.1} parent=11 // pred_check
        %p140 = pneg %p57
      $region14: #{sublayer_connection.1} parent=11 // pred_check_branch
        %142 = sbr.rel (%p140) target = $region16
      $region15: #{sublayer_connection.1} parent=11 // pred_region
        _
      $region16: #{sublayer_connection.1} parent=11 // pred_fallthru
        _
      // Predicated region
      $region17: #{sublayer_connection.1} parent=11 // pred_check
        %p143 = pneg %p78
      $region18: #{sublayer_connection.1} parent=11 // pred_check_branch
        %145 = sbr.rel (%p143) target = $region20
      $region19: #{sublayer_connection.1} parent=11 // pred_region
        _
      $region20: #{sublayer_connection.1} parent=11 // pred_fallthru
        _
      // Predicated region
      $region21: #{sublayer_connection.1} parent=11 // pred_check
        %p146 = pneg %p99
      $region22: #{sublayer_connection.1} parent=11 // pred_check_branch
        %148 = sbr.rel (%p146) target = $region24
      $region23: #{sublayer_connection.1} parent=11 // pred_region
        _
      $region24: #{sublayer_connection.1} parent=11 // pred_fallthru
        _
    $region12: #{sublayer_connection.1} parent=5 // pred_fallthru
      _
    %p149 = scmp.lt.s32.totalorder %s10, 2
    // Predicated region
    $region25: #{sublayer_connection.1} parent=5 // pred_check
      %p150 = pneg %p149
    $region26: #{sublayer_connection.1} parent=5 // pred_check_branch
      %152 = sbr.rel (%p150) target = $region28
    $region27: #{sublayer_connection.1} parent=5 // pred_region
      // Predicated region
      $region29: #{sublayer_connection.1} parent=27 // pred_check
        %p153 = pneg %p30
      $region30: #{sublayer_connection.1} parent=27 // pred_check_branch
        %155 = sbr.rel (%p153) target = $region32
      $region31: #{sublayer_connection.1} parent=27 // pred_region
        %p156 = scmp.lt.s32.totalorder %s10, 1
        %s157 = scalar_select %p156, %s10, 1
        %s158 = smul.addr %s157, 8
        %s159 = scalar_lea.vmem %s0, %s158
      $region32: #{sublayer_connection.1} parent=27 // pred_fallthru
        _
    $region28: #{sublayer_connection.1} parent=5 // pred_fallthru
      _
    %p160 = scmp.le.s32.totalorder 1, %s10
    %p161 = scmp.lt.s32.totalorder %s10, 3
    %p162 = pnand %p160, %p161
    %p163 = pneg %p162
    // Predicated region
    $region33: #{sublayer_connection.1} parent=5 // pred_check
      _
    $region34: #{sublayer_connection.1} parent=5 // pred_check_branch
      %165 = sbr.rel (%p162) target = $region36
    $region35: #{sublayer_connection.1} parent=5 // pred_region
      %s166 = ssub.s32 %s10, 1
      %p167 = scmp.lt.s32.totalorder %s15, 1
      %s168 = scalar_select %p167, %s15, 1
      %s169 = smul.addr %s168, 8
      %s170 = scalar_lea.vmem %s0, %s169
      %p171 = pneg %p36
      %p172 = pneg %p33
      %p173 = pneg %p57
      %p174 = pneg %p54
      %p175 = pneg %p78
      %p176 = pneg %p75
      %p177 = pneg %p99
      %p178 = pneg %p96
      %p179 = pneg %p125
      %p180 = pneg %p122
      %p181 = scmp.lt.s32.totalorder %s15, 1
      %s182 = scalar_select %p181, %s15, 1
      %s183 = smul.addr %s182, 8
      %s184 = scalar_lea.vmem %s4, %s183
      %p185 = scmp.lt.s32.totalorder %s15, 1
      %s186 = scalar_select %p185, %s15, 1
      %s187 = smul.addr %s186, 8
      %s188 = scalar_lea.vmem %s0, %s187
      %p189 = scmp.lt.s32.totalorder %s15, 1
      %s190 = scalar_select %p189, %s15, 1
      %s191 = smul.addr %s190, 8
      %s192 = scalar_lea.vmem %s4, %s191
      %v194 = vld [vmem:[%s188] sm:$0xff]
      %v195 = vld [vmem:[%s1] sm:$0x1]
      %v196 = vld [vmem:[%s1 + $0x1] sm:$0x1]
      %197 = vadd.xlane.f32.xlu0 %v194
      %v198 = vpop.xlane.xlu0 %197
      %v199 = vmul.f32 %v198, 0.03125
      %v200 = vsub.f32 %v194, %v199
      %v201 = vmul.f32 %v200, %v200
      %202 = vadd.xlane.f32.xlu0 %v201
      %v203 = vpop.xlane.xlu0 %202
      %v204 = vmul.f32 %v199, %v199
      %v205 = vmul.f32 %v204, 96.0
      %v206 = vsub.f32 %v203, %v205
      %v207 = vmul.f32 %v206, 0.032258064
      %v208 = vrsqrt.pop %v207
      %v209 = vmul.f32 %v207, %v208
      %vm210 = vcmp.eq.f32.partialorder %v207, inf
      %v211 = vsel %vm210, %v207, %v209
      %vm212 = vcmp.eq.f32.partialorder %v207, 0.0
      %v213 = vand.u32 %v207, 2147483648
      %v214 = vsel %vm212, %v213, %v211
      %v215 = vadd.f32 %v214, 1e-06
      %v216 = vrcp.pop %v215
      %v217 = vmul.f32 %v200, %v216
      %v218 = vlaneseq
      %v219 = vshrl.u32 %v218, 7
      %v220 = vsub.s32 0, %v219
      %v221 = vrot.slane %v195, %v220
      %v222 = vmul.f32 %v217, %v221
      %v223 = vlaneseq
      %v224 = vshrl.u32 %v223, 7
      %v225 = vsub.s32 0, %v224
      %v226 = vrot.slane %v196, %v225
      %v227 = vadd.f32 %v222, %v226
      %v228 = vpack.c.bf16 %v227, %v227
      %v229 = vld [vmem:[%s3] sm:$0xf]
      %v230 = vld [vmem:[%s3 + $0x4] sm:$0xf]
      %v231 = vld [vmem:[%s3 + $0x8] sm:$0xf]
      %v232 = vld [vmem:[%s3 + $0xc] sm:$0xf]
      %v233 = vld [vmem:[%s3 + $0x10] sm:$0xf]
      %v234 = vld [vmem:[%s3 + $0x14] sm:$0xf]
      %v235 = vld [vmem:[%s3 + $0x18] sm:$0xf]
      %v236 = vld [vmem:[%s3 + $0x1c] sm:$0xf]
      %v237 = vld [vmem:[%s3 + $0x20] sm:$0xf]
      %v238 = vld [vmem:[%s3 + $0x24] sm:$0xf]
      %v239 = vld [vmem:[%s3 + $0x28] sm:$0xf]
      %v240 = vld [vmem:[%s3 + $0x2c] sm:$0xf]
      %v241 = vld [vmem:[%s3 + $0x30] sm:$0xf]
      %v242 = vld [vmem:[%s3 + $0x34] sm:$0xf]
      %v243 = vld [vmem:[%s3 + $0x38] sm:$0xf]
      %v244 = vld [vmem:[%s3 + $0x3c] sm:$0xf]
      %v245 = vld [vmem:[%s2] sm:$0x1]
      %v247 = vlaneseq
      %v248 = vshrl.u32 %v247, 7
      %v249 = vsub.s32 0, %v248
      %v250 = vrot.slane %v245, %v249
      %v268 = vunpack.c.l.b16 %v229
      %v269 = vunpack.c.l.b16 %v230
      %v270 = vunpack.c.l.b16 %v231
      %v271 = vunpack.c.l.b16 %v232
      %v272 = vunpack.c.l.b16 %v233
      %v273 = vunpack.c.l.b16 %v234
      %v274 = vunpack.c.l.b16 %v235
      %v275 = vunpack.c.l.b16 %v236
      %v276 = vunpack.c.l.b16 %v237
      %v277 = vunpack.c.l.b16 %v238
      %v278 = vunpack.c.l.b16 %v239
      %v279 = vunpack.c.l.b16 %v240
      %v280 = vunpack.c.l.b16 %v241
      %v281 = vunpack.c.l.b16 %v242
      %v282 = vunpack.c.l.b16 %v243
      %v283 = vunpack.c.l.b16 %v244
      %v284 = vpack.c.b16 %v269, %v268
      %v285 = vpack.c.b16 %v271, %v270
      %v286 = vpack.c.b16 %v273, %v272
      %v287 = vpack.c.b16 %v275, %v274
      %v288 = vpack.c.b16 %v277, %v276
      %v289 = vpack.c.b16 %v279, %v278
      %v290 = vpack.c.b16 %v281, %v280
      %v291 = vpack.c.b16 %v283, %v282
      %300 = vmatprep.subr.bf16.mxu0 0
      %301 = vmatpush1.bf16.msra.mxu0 %v284
      %302 = vmatprep.subr.bf16.mxu0 0
      %303 = vmatpush1.bf16.msra.mxu0 %v285
      %304 = vmatprep.subr.bf16.mxu0 0
      %305 = vmatpush1.bf16.msra.mxu0 %v286
      %306 = vmatprep.subr.bf16.mxu0 0
      %307 = vmatpush1.bf16.msra.mxu0 %v287
      %308 = vmatprep.subr.bf16.mxu0 0
      %309 = vmatpush1.bf16.msra.mxu0 %v288
      %310 = vmatprep.subr.bf16.mxu0 0
      %311 = vmatpush1.bf16.msra.mxu0 %v289
      %312 = vmatprep.subr.bf16.mxu0 0
      %313 = vmatpush1.bf16.msra.mxu0 %v290
      %314 = vmatprep.subr.bf16.mxu0 0
      %315 = vmatpush1.bf16.msra.mxu0 %v291
      %316 = vmatprep.subr.bf16.mxu0 0
      %317 = vmatpush1.bf16.msra.mxu0 0
      %318 = vmatprep.subr.bf16.mxu0 0
      %319 = vmatpush1.bf16.msra.mxu0 0
      %320 = vmatprep.subr.bf16.mxu0 0
      %321 = vmatpush1.bf16.msra.mxu0 0
      %322 = vmatprep.subr.bf16.mxu0 0
      %323 = vmatpush1.bf16.msra.mxu0 0
      %324 = vmatprep.subr.bf16.mxu0 0
      %325 = vmatpush1.bf16.msra.mxu0 0
      %326 = vmatprep.subr.bf16.mxu0 0
      %327 = vmatpush1.bf16.msra.mxu0 0
      %328 = vmatprep.subr.bf16.mxu0 0
      %329 = vmatpush1.bf16.msra.mxu0 0
      %330 = vmatprep.subr.bf16.mxu0 0
      %331 = vmatpush1.bf16.msra.mxu0 0
      %332 = vmatprep.mubr.bf16.mxu0 0
      %333 = vmatmul.mubr.bf16.gmra.mrb[0].mxu0 %v228
      %v334 = vpop.f32.mrb[0].mxu0
      %v335 = vadd.f32 %v250, %v334
      %v336 = vpop.f32.mrb[0].mxu0
      %v337 = vpop.f32.mrb[0].mxu0
      %v338 = vpop.f32.mrb[0].mxu0
      %339 = vdwg.mxu0
      %v340 = vadd.f32 %v194, %v335
      %341 = vst [vmem:[%s192] sm:$0xff] %v340
      %p342 = scmp.lt.s32.totalorder %s15, 1
      %s343 = scalar_select %p342, %s15, 1
      %s344 = smul.addr %s343, 8
      %s345 = scalar_lea.vmem %s4, %s344
      // Predicated region
      $region37: #{sublayer_connection.1} parent=35 // pred_check
        %p346 = pneg %p122
      $region38: #{sublayer_connection.1} parent=35 // pred_check_branch
        %348 = sbr.rel (%p346) target = $region40
      $region39: #{sublayer_connection.1} parent=35 // pred_region
        _
      $region40: #{sublayer_connection.1} parent=35 // pred_fallthru
        _
    $region36: #{sublayer_connection.1} parent=5 // pred_fallthru
      _
    %p349 = scmp.le.s32.totalorder 2, %s10
    // Predicated region
    $region41: #{sublayer_connection.1} parent=5 // pred_check
      %p350 = pneg %p349
    $region42: #{sublayer_connection.1} parent=5 // pred_check_branch
      %352 = sbr.rel (%p350) target = $region44
    $region43: #{sublayer_connection.1} parent=5 // pred_region
      %s353 = ssub.s32 %s10, 2
      // Predicated region
      $region45: #{sublayer_connection.1} parent=43 // pred_check
        %p354 = pneg %p128
      $region46: #{sublayer_connection.1} parent=43 // pred_check_branch
        %356 = sbr.rel (%p354) target = $region48
      $region47: #{sublayer_connection.1} parent=43 // pred_region
        %p357 = scmp.lt.s32.totalorder %s16, 1
        %s358 = scalar_select %p357, %s16, 1
        %s359 = smul.addr %s358, 8
        %s360 = scalar_lea.vmem %s4, %s359
      $region48: #{sublayer_connection.1} parent=43 // pred_fallthru
        _
    $region44: #{sublayer_connection.1} parent=5 // pred_fallthru
      _
  $region6: #{sublayer_connection.1} parent=0 // loop_footer
    %s14 = sadd.s32 1, %s10
  $region7: #{sublayer_connection.1} parent=0 // loop_footer_branch
    %9 = sbr.rel target = $region3
  $region8: #{sublayer_connection.1} parent=0 // loop_exit
    _

</llo_original>
